<compile_context>
chip_gen: v5e
topology: v5e:2x2
jax: 0.10.0
libtpu: 0.0.40
codegen_flags: <defaults>
</compile_context>

<pallas_src>
import jax
import jax.numpy as jnp
from jax.experimental import pallas as pl
from jax.experimental.pallas import tpu as pltpu

C_IN = 128   # fixed by the module: ConvBlock(128, 64, ...)
C_MID = 64
KS = 3       # kss = [3, 3, 3]
BN_EPS = 1e-5


def _seg_head_kernel(x_ref, w1_ref, b1_ref, w2_ref, b2_ref, w3_ref, b3_ref, mt_ref, o_ref):
    # x_ref block: (Bt, C_IN, L) in native NCL layout (channels on sublanes, L on lanes).
    bt, _, L = x_ref.shape
    c_out = o_ref.shape[1]
    W = bt * (L + 2)           # lane-stacked frame width: each sample gets L data + 2 pad cols
    cdt = jnp.bfloat16

    def stack_padded(samples):
        # samples: list of Bt arrays (C, L) -> (C, W + 2), with 2 zero columns between/around
        # samples.  Data columns of sample b live at [2 + b*(L+2), 1 + b*(L+2) + L] of the
        # (W+2)-wide buffer; the pad columns supply the 'same' conv's left/right zero padding.
        c = samples[0].shape[0]
        z2 = jnp.zeros((c, 2), cdt)
        pieces = [z2]
        for s in samples:
            pieces += [s.astype(cdt), z2]
        return jnp.concatenate(pieces, axis=1)

    def taps(pext):
        # (C, W+2) -> (KS*C, W): row-block k is the k-shifted view (input position p+k-1 for
        # frame output position p), matching the fused weight layout (tap-major blocks of C).
        return jnp.concatenate([pext[:, k:k + W] for k in range(KS)], axis=0)

    def convblock(samples, w_ref, b_ref, relu):
        operand = taps(stack_padded(samples))                        # (KS*C_in, W) bf16
        acc = jnp.dot(w_ref[...], operand,
                      preferred_element_type=jnp.float32) + b_ref[...]
        return jnp.maximum(acc, 0.0) if relu else acc                # (C_out, W) f32

    def data_cols(h):
        # Per-sample data columns of a frame-wide activation (drops the garbage at pad cols;
        # stack_padded re-inserts fresh zeros for the next 'same' conv).
        return [h[:, b * (L + 2) + 1: b * (L + 2) + 1 + L] for b in range(bt)]

    # --- ConvBlock1: Conv1d(128->64, k=3, same) + folded BN + ReLU, all Bt samples at once ---
    h1 = convblock([x_ref[b] for b in range(bt)], w1_ref, b1_ref, True)
    # --- ConvBlock2: Conv1d(64->64) + folded BN + ReLU ---
    h2 = convblock(data_cols(h1), w2_ref, b2_ref, True)
    # --- ConvBlock3: Conv1d(64->c_out) + folded BN, no activation ---
    h3 = convblock(data_cols(h2), w3_ref, b3_ref, False)

    # --- Flatten(start_dim=2) is a no-op on (B, C, L); Upsample(linear) = matmul with M^T ---
    # Stack all samples on sublanes -> one MXU matmul instead of Bt tiny (c_out, L) matmuls.
    h3_stack = jnp.concatenate([h.astype(cdt) for h in data_cols(h3)], axis=0)  # (bt*c_out, L)
    up = jnp.dot(h3_stack, mt_ref[...],
                 preferred_element_type=jnp.float32)                 # (bt*c_out, L_out) f32
    for b in range(bt):
        o_ref[b] = up[b * c_out:(b + 1) * c_out].astype(o_ref.dtype)


def _linear_upsample_matrix(l_in, l_out):
    """PyTorch nn.Upsample(mode='linear', align_corners=False) as a (l_out, l_in) matrix."""
    scale = l_in / l_out
    i = jnp.arange(l_out, dtype=jnp.float32)
    src = jnp.maximum((i + 0.5) * scale - 0.5, 0.0)
    idx0 = jnp.minimum(jnp.floor(src).astype(jnp.int32), l_in - 1)
    lam = src - idx0.astype(jnp.float32)
    idx1 = jnp.minimum(idx0 + 1, l_in - 1)
    m0 = jax.nn.one_hot(idx0, l_in, dtype=jnp.float32) * (1.0 - lam)[:, None]
    m1 = jax.nn.one_hot(idx1, l_in, dtype=jnp.float32) * lam[:, None]
    return m0 + m1


def _fold_bn_fused(w_oik, gamma, beta, mean, var):
    """Fold eval-mode BN into the conv; return tap-fused weight (C_out, K*C_in) bf16 + bias."""
    s = gamma / jnp.sqrt(var + BN_EPS)                         # (C_out,)
    w = w_oik * s[:, None, None]                               # (C_out, C_in, K)
    k = w.shape[-1]
    w_fused = jnp.concatenate([w[:, :, t] for t in range(k)], axis=1)   # (C_out, K*C_in)
    b = (beta - mean * s)[:, None]                             # (C_out, 1)
    return w_fused.astype(jnp.bfloat16), b.astype(jnp.float32)


def segmentation_head(x, params, output_len, block_batch=8):
    """x: (B, 128, L) float32 (PyTorch NCL). Returns squeeze of (B, c_out, output_len)."""
    B, C, L = x.shape
    assert C == C_IN
    c_out = params["w3"].shape[0]

    w1, b1 = _fold_bn_fused(params["w1"], params["bn1_g"], params["bn1_b"],
                            params["bn1_m"], params["bn1_v"])
    w2, b2 = _fold_bn_fused(params["w2"], params["bn2_g"], params["bn2_b"],
                            params["bn2_m"], params["bn2_v"])
    w3, b3 = _fold_bn_fused(params["w3"], params["bn3_g"], params["bn3_b"],
                            params["bn3_m"], params["bn3_v"])
    mt = _linear_upsample_matrix(L, output_len).T.astype(jnp.bfloat16)   # (L, L_out)

    # Multiple samples per grid step; pad the batch only if it does not divide evenly.
    bt = max(1, min(block_batch, B))
    b_pad = pl.cdiv(B, bt) * bt
    x_in = x.astype(jnp.float32)
    if b_pad != B:
        x_in = jnp.pad(x_in, ((0, b_pad - B), (0, 0), (0, 0)))

    out = pl.pallas_call(
        _seg_head_kernel,
        out_shape=jax.ShapeDtypeStruct((b_pad, c_out, output_len), jnp.float32),
        grid_spec=pltpu.PrefetchScalarGridSpec(
            num_scalar_prefetch=0,
            grid=(b_pad // bt,),
            in_specs=[
                pl.BlockSpec((bt, C_IN, L), lambda g: (g, 0, 0)),
                pl.BlockSpec((C_MID, KS * C_IN), lambda g: (0, 0)),
                pl.BlockSpec((C_MID, 1), lambda g: (0, 0)),
                pl.BlockSpec((C_MID, KS * C_MID), lambda g: (0, 0)),
                pl.BlockSpec((C_MID, 1), lambda g: (0, 0)),
                pl.BlockSpec((c_out, KS * C_MID), lambda g: (0, 0)),
                pl.BlockSpec((c_out, 1), lambda g: (0, 0)),
                pl.BlockSpec((L, output_len), lambda g: (0, 0)),
            ],
            out_specs=pl.BlockSpec((bt, c_out, output_len), lambda g: (g, 0, 0)),
        ),
        compiler_params=pltpu.CompilerParams(dimension_semantics=("parallel",)),
    )(x_in, w1, b1, w2, b2, w3, b3, mt)

    # Output is already in PyTorch NCL layout; drop batch padding and .squeeze().
    return jnp.squeeze(out[:B])


def _reference(x, params, output_len):
    """Pure-JAX f32 reference matching the PyTorch forward (eval-mode BN)."""
    def convblock(h, w, g, b, mn, v, act):
        y = jax.lax.conv_general_dilated(
            h, w, window_strides=(1,), padding=[(1, 1)],
            dimension_numbers=("NCH", "OIH", "NCH"))
        s = g / jnp.sqrt(v + BN_EPS)
        y = y * s[None, :, None] + (b - mn * s)[None, :, None]
        return jnp.maximum(y, 0.0) if act else y

    h = convblock(x, params["w1"], params["bn1_g"], params["bn1_b"], params["bn1_m"], params["bn1_v"], True)
    h = convblock(h, params["w2"], params["bn2_g"], params["bn2_b"], params["bn2_m"], params["bn2_v"], True)
    h = convblock(h, params["w3"], params["bn3_g"], params["bn3_b"], params["bn3_m"], params["bn3_v"], False)
    m = _linear_upsample_matrix(h.shape[-1], output_len)           # (L_out, L_in)
    up = jnp.einsum("ol,bcl->bco", m, h)
    return jnp.squeeze(up)


if __name__ == "__main__":
    B, L = 2, 16
    c_out, output_len = 4, 32

    key = jax.random.PRNGKey(0)
    kx, k1, k2, k3 = jax.random.split(key, 4)
    x = jax.random.normal(kx, (B, C_IN, L), jnp.float32)

    def bn(n, a, b_, c, d):
        return (jnp.full((n,), a, jnp.float32), jnp.full((n,), b_, jnp.float32),
                jnp.full((n,), c, jnp.float32), jnp.full((n,), d, jnp.float32))

    bn1 = bn(C_MID, 1.10, 0.05, 0.02, 0.90)
    bn2 = bn(C_MID, 0.95, -0.03, -0.01, 1.10)
    bn3 = bn(c_out, 1.05, 0.10, 0.03, 0.80)

    params = {
        "w1": jax.random.normal(k1, (C_MID, C_IN, KS), jnp.float32) * 0.05,
        "w2": jax.random.normal(k2, (C_MID, C_MID, KS), jnp.float32) * 0.05,
        "w3": jax.random.normal(k3, (c_out, C_MID, KS), jnp.float32) * 0.05,
        "bn1_g": bn1[0], "bn1_b": bn1[1], "bn1_m": bn1[2], "bn1_v": bn1[3],
        "bn2_g": bn2[0], "bn2_b": bn2[1], "bn2_m": bn2[2], "bn2_v": bn2[3],
        "bn3_g": bn3[0], "bn3_b": bn3[1], "bn3_m": bn3[2], "bn3_v": bn3[3],
    }

    out = segmentation_head(x, params, output_len)
    out = jax.block_until_ready(out)

    ref = _reference(x, params, output_len)
    assert out.shape == ref.shape == (B, c_out, output_len), (out.shape, ref.shape)
    # bf16 matmul operands (f32 accumulation) -> relaxed tolerance vs. the f32 reference.
    err = float(jnp.max(jnp.abs(out - ref)))
    assert jnp.allclose(out, ref, rtol=5e-2, atol=5e-2), err

    print("KERNEL_OK")
</pallas_src>

<mosaic_0001>
module attributes {stable_mosaic.version = 11 : i64} {
  func.func @_seg_head_kernel(%arg0: i32, %arg1: memref<2x128x16xf32, #tpu.memory_space<vmem>>, %arg2: memref<64x384xbf16, #tpu.memory_space<vmem>>, %arg3: memref<64x1xf32, #tpu.memory_space<vmem>>, %arg4: memref<64x192xbf16, #tpu.memory_space<vmem>>, %arg5: memref<64x1xf32, #tpu.memory_space<vmem>>, %arg6: memref<4x192xbf16, #tpu.memory_space<vmem>>, %arg7: memref<4x1xf32, #tpu.memory_space<vmem>>, %arg8: memref<16x32xbf16, #tpu.memory_space<vmem>>, %arg9: memref<2x4x32xf32, #tpu.memory_space<vmem>>) attributes {dimension_semantics = [#tpu.dimension_semantics<parallel>], iteration_bounds = array<i64: 1>, scalar_prefetch = 0 : i64, scratch_operands = 0 : i64, tpu.core_type = #tpu.core_type<tc>, window_params = [{transform_indices = @transform_0, window_bounds = array<i64: 2, 128, 16>}, {pipeline_mode = #tpu.pipeline_mode<synchronous>, transform_indices = @transform_1, window_bounds = array<i64: 64, 384>}, {pipeline_mode = #tpu.pipeline_mode<synchronous>, transform_indices = @transform_2, window_bounds = array<i64: 64, 1>}, {pipeline_mode = #tpu.pipeline_mode<synchronous>, transform_indices = @transform_3, window_bounds = array<i64: 64, 192>}, {pipeline_mode = #tpu.pipeline_mode<synchronous>, transform_indices = @transform_4, window_bounds = array<i64: 64, 1>}, {pipeline_mode = #tpu.pipeline_mode<synchronous>, transform_indices = @transform_5, window_bounds = array<i64: 4, 192>}, {pipeline_mode = #tpu.pipeline_mode<synchronous>, transform_indices = @transform_6, window_bounds = array<i64: 4, 1>}, {pipeline_mode = #tpu.pipeline_mode<synchronous>, transform_indices = @transform_7, window_bounds = array<i64: 16, 32>}, {transform_indices = @transform_8, window_bounds = array<i64: 2, 4, 32>}]} {
    %c0 = arith.constant 0 : index
    %c0_0 = arith.constant 0 : index
    %c0_1 = arith.constant 0 : index
    %0 = vector.load %arg1[%c0, %c0_0, %c0_1] : memref<2x128x16xf32, #tpu.memory_space<vmem>>, vector<1x128x16xf32>
    %1 = vector.shape_cast %0 : vector<1x128x16xf32> to vector<128x16xf32>
    %c1 = arith.constant 1 : index
    %c0_2 = arith.constant 0 : index
    %c0_3 = arith.constant 0 : index
    %2 = vector.load %arg1[%c1, %c0_2, %c0_3] : memref<2x128x16xf32, #tpu.memory_space<vmem>>, vector<1x128x16xf32>
    %3 = vector.shape_cast %2 : vector<1x128x16xf32> to vector<128x16xf32>
    %cst = arith.constant 0.000000e+00 : bf16
    %4 = vector.broadcast %cst : bf16 to vector<128x2xbf16>
    %5 = arith.truncf %1 : vector<128x16xf32> to vector<128x16xbf16>
    %6 = arith.truncf %3 : vector<128x16xf32> to vector<128x16xbf16>
    %7 = tpu.concatenate %4, %5, %4, %6, %4 in 1 : vector<128x2xbf16>, vector<128x16xbf16>, vector<128x2xbf16>, vector<128x16xbf16>, vector<128x2xbf16> -> vector<128x38xbf16>
    %8 = vector.extract_strided_slice %7 {offsets = [0, 0], sizes = [128, 36], strides = [1, 1]} : vector<128x38xbf16> to vector<128x36xbf16>
    %9 = vector.extract_strided_slice %7 {offsets = [0, 1], sizes = [128, 36], strides = [1, 1]} : vector<128x38xbf16> to vector<128x36xbf16>
    %10 = vector.extract_strided_slice %7 {offsets = [0, 2], sizes = [128, 36], strides = [1, 1]} : vector<128x38xbf16> to vector<128x36xbf16>
    %11 = tpu.concatenate %8, %9, %10 in 0 : vector<128x36xbf16>, vector<128x36xbf16>, vector<128x36xbf16> -> vector<384x36xbf16>
    %c0_4 = arith.constant 0 : index
    %c0_5 = arith.constant 0 : index
    %12 = vector.load %arg2[%c0_4, %c0_5] : memref<64x384xbf16, #tpu.memory_space<vmem>>, vector<64x384xbf16>
    %cst_6 = arith.constant dense<0.000000e+00> : vector<64x36xf32>
    %13 = tpu.matmul %12, %11, %cst_6 {dimension_numbers = #tpu.dot_dimension_numbers<[1], [0], [0], [1], [0, 0, 1, 1], [], []>} : vector<64x384xbf16>, vector<384x36xbf16>, vector<64x36xf32> -> vector<64x36xf32>
    %c0_7 = arith.constant 0 : index
    %c0_8 = arith.constant 0 : index
    %14 = vector.load %arg3[%c0_7, %c0_8] : memref<64x1xf32, #tpu.memory_space<vmem>>, vector<64x1xf32>
    %15 = vector.broadcast %14 : vector<64x1xf32> to vector<64x36xf32>
    %16 = arith.addf %13, %15 : vector<64x36xf32>
    %cst_9 = arith.constant 0.000000e+00 : f32
    %17 = vector.broadcast %cst_9 : f32 to vector<64x36xf32>
    %18 = arith.maximumf %16, %17 : vector<64x36xf32>
    %19 = vector.extract_strided_slice %18 {offsets = [0, 1], sizes = [64, 16], strides = [1, 1]} : vector<64x36xf32> to vector<64x16xf32>
    %20 = vector.extract_strided_slice %18 {offsets = [0, 19], sizes = [64, 16], strides = [1, 1]} : vector<64x36xf32> to vector<64x16xf32>
    %cst_10 = arith.constant 0.000000e+00 : bf16
    %21 = vector.broadcast %cst_10 : bf16 to vector<64x2xbf16>
    %22 = arith.truncf %19 : vector<64x16xf32> to vector<64x16xbf16>
    %23 = arith.truncf %20 : vector<64x16xf32> to vector<64x16xbf16>
    %24 = tpu.concatenate %21, %22, %21, %23, %21 in 1 : vector<64x2xbf16>, vector<64x16xbf16>, vector<64x2xbf16>, vector<64x16xbf16>, vector<64x2xbf16> -> vector<64x38xbf16>
    %25 = vector.extract_strided_slice %24 {offsets = [0, 0], sizes = [64, 36], strides = [1, 1]} : vector<64x38xbf16> to vector<64x36xbf16>
    %26 = vector.extract_strided_slice %24 {offsets = [0, 1], sizes = [64, 36], strides = [1, 1]} : vector<64x38xbf16> to vector<64x36xbf16>
    %27 = vector.extract_strided_slice %24 {offsets = [0, 2], sizes = [64, 36], strides = [1, 1]} : vector<64x38xbf16> to vector<64x36xbf16>
    %28 = tpu.concatenate %25, %26, %27 in 0 : vector<64x36xbf16>, vector<64x36xbf16>, vector<64x36xbf16> -> vector<192x36xbf16>
    %c0_11 = arith.constant 0 : index
    %c0_12 = arith.constant 0 : index
    %29 = vector.load %arg4[%c0_11, %c0_12] : memref<64x192xbf16, #tpu.memory_space<vmem>>, vector<64x192xbf16>
    %cst_13 = arith.constant dense<0.000000e+00> : vector<64x36xf32>
    %30 = tpu.matmul %29, %28, %cst_13 {dimension_numbers = #tpu.dot_dimension_numbers<[1], [0], [0], [1], [0, 0, 1, 1], [], []>} : vector<64x192xbf16>, vector<192x36xbf16>, vector<64x36xf32> -> vector<64x36xf32>
    %c0_14 = arith.constant 0 : index
    %c0_15 = arith.constant 0 : index
    %31 = vector.load %arg5[%c0_14, %c0_15] : memref<64x1xf32, #tpu.memory_space<vmem>>, vector<64x1xf32>
    %32 = vector.broadcast %31 : vector<64x1xf32> to vector<64x36xf32>
    %33 = arith.addf %30, %32 : vector<64x36xf32>
    %cst_16 = arith.constant 0.000000e+00 : f32
    %34 = vector.broadcast %cst_16 : f32 to vector<64x36xf32>
    %35 = arith.maximumf %33, %34 : vector<64x36xf32>
    %36 = vector.extract_strided_slice %35 {offsets = [0, 1], sizes = [64, 16], strides = [1, 1]} : vector<64x36xf32> to vector<64x16xf32>
    %37 = vector.extract_strided_slice %35 {offsets = [0, 19], sizes = [64, 16], strides = [1, 1]} : vector<64x36xf32> to vector<64x16xf32>
    %cst_17 = arith.constant 0.000000e+00 : bf16
    %38 = vector.broadcast %cst_17 : bf16 to vector<64x2xbf16>
    %39 = arith.truncf %36 : vector<64x16xf32> to vector<64x16xbf16>
    %40 = arith.truncf %37 : vector<64x16xf32> to vector<64x16xbf16>
    %41 = tpu.concatenate %38, %39, %38, %40, %38 in 1 : vector<64x2xbf16>, vector<64x16xbf16>, vector<64x2xbf16>, vector<64x16xbf16>, vector<64x2xbf16> -> vector<64x38xbf16>
    %42 = vector.extract_strided_slice %41 {offsets = [0, 0], sizes = [64, 36], strides = [1, 1]} : vector<64x38xbf16> to vector<64x36xbf16>
    %43 = vector.extract_strided_slice %41 {offsets = [0, 1], sizes = [64, 36], strides = [1, 1]} : vector<64x38xbf16> to vector<64x36xbf16>
    %44 = vector.extract_strided_slice %41 {offsets = [0, 2], sizes = [64, 36], strides = [1, 1]} : vector<64x38xbf16> to vector<64x36xbf16>
    %45 = tpu.concatenate %42, %43, %44 in 0 : vector<64x36xbf16>, vector<64x36xbf16>, vector<64x36xbf16> -> vector<192x36xbf16>
    %c0_18 = arith.constant 0 : index
    %c0_19 = arith.constant 0 : index
    %46 = vector.load %arg6[%c0_18, %c0_19] : memref<4x192xbf16, #tpu.memory_space<vmem>>, vector<4x192xbf16>
    %cst_20 = arith.constant dense<0.000000e+00> : vector<4x36xf32>
    %47 = tpu.matmul %46, %45, %cst_20 {dimension_numbers = #tpu.dot_dimension_numbers<[1], [0], [0], [1], [0, 0, 1, 1], [], []>} : vector<4x192xbf16>, vector<192x36xbf16>, vector<4x36xf32> -> vector<4x36xf32>
    %c0_21 = arith.constant 0 : index
    %c0_22 = arith.constant 0 : index
    %48 = vector.load %arg7[%c0_21, %c0_22] : memref<4x1xf32, #tpu.memory_space<vmem>>, vector<4x1xf32>
    %49 = vector.broadcast %48 : vector<4x1xf32> to vector<4x36xf32>
    %50 = arith.addf %47, %49 : vector<4x36xf32>
    %51 = vector.extract_strided_slice %50 {offsets = [0, 1], sizes = [4, 16], strides = [1, 1]} : vector<4x36xf32> to vector<4x16xf32>
    %52 = vector.extract_strided_slice %50 {offsets = [0, 19], sizes = [4, 16], strides = [1, 1]} : vector<4x36xf32> to vector<4x16xf32>
    %53 = arith.truncf %51 : vector<4x16xf32> to vector<4x16xbf16>
    %54 = arith.truncf %52 : vector<4x16xf32> to vector<4x16xbf16>
    %55 = tpu.concatenate %53, %54 in 0 : vector<4x16xbf16>, vector<4x16xbf16> -> vector<8x16xbf16>
    %c0_23 = arith.constant 0 : index
    %c0_24 = arith.constant 0 : index
    %56 = vector.load %arg8[%c0_23, %c0_24] : memref<16x32xbf16, #tpu.memory_space<vmem>>, vector<16x32xbf16>
    %cst_25 = arith.constant dense<0.000000e+00> : vector<8x32xf32>
    %57 = tpu.matmul %55, %56, %cst_25 {dimension_numbers = #tpu.dot_dimension_numbers<[1], [0], [0], [1], [0, 0, 1, 1], [], []>} : vector<8x16xbf16>, vector<16x32xbf16>, vector<8x32xf32> -> vector<8x32xf32>
    %58 = vector.extract_strided_slice %57 {offsets = [0, 0], sizes = [4, 32], strides = [1, 1]} : vector<8x32xf32> to vector<4x32xf32>
    %c0_26 = arith.constant 0 : index
    %c0_27 = arith.constant 0 : index
    %c0_28 = arith.constant 0 : index
    %59 = vector.load %arg9[%c0_26, %c0_27, %c0_28] : memref<2x4x32xf32, #tpu.memory_space<vmem>>, vector<1x4x32xf32>
    %60 = vector.shape_cast %59 : vector<1x4x32xf32> to vector<4x32xf32>
    %61 = vector.shape_cast %58 : vector<4x32xf32> to vector<1x4x32xf32>
    tpu.vector_store %arg9[%c0_26, %c0_27, %c0_28], %61 {strides = array<i32>} : memref<2x4x32xf32, #tpu.memory_space<vmem>>, vector<1x4x32xf32>,
    %62 = vector.extract_strided_slice %57 {offsets = [4, 0], sizes = [4, 32], strides = [1, 1]} : vector<8x32xf32> to vector<4x32xf32>
    %c1_29 = arith.constant 1 : index
    %c0_30 = arith.constant 0 : index
    %c0_31 = arith.constant 0 : index
    %63 = vector.load %arg9[%c1_29, %c0_30, %c0_31] : memref<2x4x32xf32, #tpu.memory_space<vmem>>, vector<1x4x32xf32>
    %64 = vector.shape_cast %63 : vector<1x4x32xf32> to vector<4x32xf32>
    %65 = vector.shape_cast %62 : vector<4x32xf32> to vector<1x4x32xf32>
    tpu.vector_store %arg9[%c1_29, %c0_30, %c0_31], %65 {strides = array<i32>} : memref<2x4x32xf32, #tpu.memory_space<vmem>>, vector<1x4x32xf32>,
    return
  }
  func.func @transform_0(%arg0: i32) -> (i32, i32, i32) {
    %c0_i32 = arith.constant 0 : i32
    %c0_i32_0 = arith.constant 0 : i32
    %c0_i32_1 = arith.constant 0 : i32
    return %arg0, %c0_i32, %c0_i32_0 : i32, i32, i32
  }
  func.func @transform_1(%arg0: i32) -> (i32, i32) {
    %c0_i32 = arith.constant 0 : i32
    %c0_i32_0 = arith.constant 0 : i32
    %c0_i32_1 = arith.constant 0 : i32
    return %c0_i32, %c0_i32_0 : i32, i32
  }
  func.func @transform_2(%arg0: i32) -> (i32, i32) {
    %c0_i32 = arith.constant 0 : i32
    %c0_i32_0 = arith.constant 0 : i32
    %c0_i32_1 = arith.constant 0 : i32
    return %c0_i32, %c0_i32_0 : i32, i32
  }
  func.func @transform_3(%arg0: i32) -> (i32, i32) {
    %c0_i32 = arith.constant 0 : i32
    %c0_i32_0 = arith.constant 0 : i32
    %c0_i32_1 = arith.constant 0 : i32
    return %c0_i32, %c0_i32_0 : i32, i32
  }
  func.func @transform_4(%arg0: i32) -> (i32, i32) {
    %c0_i32 = arith.constant 0 : i32
    %c0_i32_0 = arith.constant 0 : i32
    %c0_i32_1 = arith.constant 0 : i32
    return %c0_i32, %c0_i32_0 : i32, i32
  }
  func.func @transform_5(%arg0: i32) -> (i32, i32) {
    %c0_i32 = arith.constant 0 : i32
    %c0_i32_0 = arith.constant 0 : i32
    %c0_i32_1 = arith.constant 0 : i32
    return %c0_i32, %c0_i32_0 : i32, i32
  }
  func.func @transform_6(%arg0: i32) -> (i32, i32) {
    %c0_i32 = arith.constant 0 : i32
    %c0_i32_0 = arith.constant 0 : i32
    %c0_i32_1 = arith.constant 0 : i32
    return %c0_i32, %c0_i32_0 : i32, i32
  }
  func.func @transform_7(%arg0: i32) -> (i32, i32) {
    %c0_i32 = arith.constant 0 : i32
    %c0_i32_0 = arith.constant 0 : i32
    %c0_i32_1 = arith.constant 0 : i32
    return %c0_i32, %c0_i32_0 : i32, i32
  }
  func.func @transform_8(%arg0: i32) -> (i32, i32, i32) {
    %c0_i32 = arith.constant 0 : i32
    %c0_i32_0 = arith.constant 0 : i32
    %c0_i32_1 = arith.constant 0 : i32
    return %arg0, %c0_i32, %c0_i32_0 : i32, i32, i32
  }
}

</mosaic_0001>

<llo_original>
// kernel: tpu_custom_call.1
$region0: #{tpu_custom_call.1}
  #allocation0 [shape = 'u32[]', space=smem, size = 0x4, offset = 0x4, fixed_abs, tag = 'smem constant byte address 0x4 - core index']
  #allocation1 [shape = 'u32[72,128]{1,0:T(1,128)}', space=vmem, size = 0x9000, scoped, tag = 'internal scratch']
  %s0 = inlined_call_operand.vmem [shape: f32[2,128,16], index: 0, kind: input, shape index: {}]
  %s1 = inlined_call_operand.vmem [shape: bf16[64,384], index: 1, kind: input, shape index: {}]
  %s2 = inlined_call_operand.vmem [shape: f32[64,1], index: 2, kind: input, shape index: {}]
  %s3 = inlined_call_operand.vmem [shape: bf16[64,192], index: 3, kind: input, shape index: {}]
  %s4 = inlined_call_operand.vmem [shape: f32[64,1], index: 4, kind: input, shape index: {}]
  %s5 = inlined_call_operand.vmem [shape: bf16[4,192], index: 5, kind: input, shape index: {}]
  %s6 = inlined_call_operand.vmem [shape: f32[4,1], index: 6, kind: input, shape index: {}]
  %s7 = inlined_call_operand.vmem [shape: bf16[16,32], index: 7, kind: input, shape index: {}]
  %s8 = inlined_call_operand.hbm [shape: f32[2,4,32], index: 8, kind: output, shape index: {}]
  %s9 = sld [smem:[#allocation0]]
  $region42: #{tpu_custom_call.1} parent=0
    _
  %s11 = ssub.s32 1, %s9
  %s12 = scalar_select 0, %s11, %s9
  $region1: #{tpu_custom_call.1} parent=0
    #allocation2 [shape = 'u8[4096]{0}', space=vmem, size = 0x1000, scoped, tag = 'output window, operand 0, single buffered']
    #allocation3 [shape = 's32[1]{0}', space=sflag, size = 0x4, scoped, tag = 'scoped memory for tpu_custom_call.1']
    %13 = vsyncpa [#allocation3], 0
    // Predicated region
    $region2: #{tpu_custom_call.1} parent=1 // pred_check
      _
    $region3: #{tpu_custom_call.1} parent=1 // pred_check_branch
      %15 = sbr.rel (0) target = $region5
    $region4: #{tpu_custom_call.1} parent=1 // pred_region
      _
    $region5: #{tpu_custom_call.1} parent=1 // pred_fallthru
      _
    // Predicated region
    $region6: #{tpu_custom_call.1} parent=1 // pred_check
      _
    $region7: #{tpu_custom_call.1} parent=1 // pred_check_branch
      %17 = sbr.rel (0) target = $region9
    $region8: #{tpu_custom_call.1} parent=1 // pred_region
      _
    $region9: #{tpu_custom_call.1} parent=1 // pred_fallthru
      _
    // Predicated region
    $region10: #{tpu_custom_call.1} parent=1 // pred_check
      _
    $region11: #{tpu_custom_call.1} parent=1 // pred_check_branch
      %19 = sbr.rel (0) target = $region13
    $region12: #{tpu_custom_call.1} parent=1 // pred_region
      _
    $region13: #{tpu_custom_call.1} parent=1 // pred_fallthru
      _
    // Predicated region
    $region14: #{tpu_custom_call.1} parent=1 // pred_check
      _
    $region15: #{tpu_custom_call.1} parent=1 // pred_check_branch
      %21 = sbr.rel (0) target = $region17
    $region16: #{tpu_custom_call.1} parent=1 // pred_region
      _
    $region17: #{tpu_custom_call.1} parent=1 // pred_fallthru
      _
    // Predicated region
    $region18: #{tpu_custom_call.1} parent=1 // pred_check
      _
    $region19: #{tpu_custom_call.1} parent=1 // pred_check_branch
      %23 = sbr.rel (0) target = $region21
    $region20: #{tpu_custom_call.1} parent=1 // pred_region
      _
    $region21: #{tpu_custom_call.1} parent=1 // pred_fallthru
      _
    // Predicated region
    $region22: #{tpu_custom_call.1} parent=1 // pred_check
      _
    $region23: #{tpu_custom_call.1} parent=1 // pred_check_branch
      %25 = sbr.rel (0) target = $region25
    $region24: #{tpu_custom_call.1} parent=1 // pred_region
      _
    $region25: #{tpu_custom_call.1} parent=1 // pred_fallthru
      _
    // Predicated region
    $region26: #{tpu_custom_call.1} parent=1 // pred_check
      _
    $region27: #{tpu_custom_call.1} parent=1 // pred_check_branch
      %27 = sbr.rel (0) target = $region29
    $region28: #{tpu_custom_call.1} parent=1 // pred_region
      _
    $region29: #{tpu_custom_call.1} parent=1 // pred_fallthru
      _
    // Predicated region
    $region30: #{tpu_custom_call.1} parent=1 // pred_check
      _
    $region31: #{tpu_custom_call.1} parent=1 // pred_check_branch
      %29 = sbr.rel (0) target = $region33
    $region32: #{tpu_custom_call.1} parent=1 // pred_region
      _
    $region33: #{tpu_custom_call.1} parent=1 // pred_fallthru
      _
    %v31 = vld [vmem:[%s0] sm:$0xff]
    %v32 = vld [vmem:[%s0 + $0x8] sm:$0xff]
    %v33 = vld [vmem:[%s0 + $0x10] sm:$0xff]
    %v34 = vld [vmem:[%s0 + $0x18] sm:$0xff]
    %v35 = vld [vmem:[%s0 + $0x20] sm:$0xff]
    %v36 = vld [vmem:[%s0 + $0x28] sm:$0xff]
    %v37 = vld [vmem:[%s0 + $0x30] sm:$0xff]
    %v38 = vld [vmem:[%s0 + $0x38] sm:$0xff]
    %v39 = vld [vmem:[%s0 + $0x40] sm:$0xff]
    %v40 = vld [vmem:[%s0 + $0x48] sm:$0xff]
    %v41 = vld [vmem:[%s0 + $0x50] sm:$0xff]
    %v42 = vld [vmem:[%s0 + $0x58] sm:$0xff]
    %v43 = vld [vmem:[%s0 + $0x60] sm:$0xff]
    %v44 = vld [vmem:[%s0 + $0x68] sm:$0xff]
    %v45 = vld [vmem:[%s0 + $0x70] sm:$0xff]
    %v46 = vld [vmem:[%s0 + $0x78] sm:$0xff]
    %s47 = scalar_lea.vmem %s0, 128
    %v48 = vld [vmem:[%s47] sm:$0xff]
    %v49 = vld [vmem:[%s47 + $0x8] sm:$0xff]
    %v50 = vld [vmem:[%s47 + $0x10] sm:$0xff]
    %v51 = vld [vmem:[%s47 + $0x18] sm:$0xff]
    %v52 = vld [vmem:[%s47 + $0x20] sm:$0xff]
    %v53 = vld [vmem:[%s47 + $0x28] sm:$0xff]
    %v54 = vld [vmem:[%s47 + $0x30] sm:$0xff]
    %v55 = vld [vmem:[%s47 + $0x38] sm:$0xff]
    %v56 = vld [vmem:[%s47 + $0x40] sm:$0xff]
    %v57 = vld [vmem:[%s47 + $0x48] sm:$0xff]
    %v58 = vld [vmem:[%s47 + $0x50] sm:$0xff]
    %v59 = vld [vmem:[%s47 + $0x58] sm:$0xff]
    %v60 = vld [vmem:[%s47 + $0x60] sm:$0xff]
    %v61 = vld [vmem:[%s47 + $0x68] sm:$0xff]
    %v62 = vld [vmem:[%s47 + $0x70] sm:$0xff]
    %v63 = vld [vmem:[%s47 + $0x78] sm:$0xff]
    %v64 = vpack.c.bf16 %v31, %v31
    %v65 = vpack.c.bf16 %v32, %v32
    %v66 = vpack.c.bf16 %v33, %v33
    %v67 = vpack.c.bf16 %v34, %v34
    %v68 = vpack.c.bf16 %v35, %v35
    %v69 = vpack.c.bf16 %v36, %v36
    %v70 = vpack.c.bf16 %v37, %v37
    %v71 = vpack.c.bf16 %v38, %v38
    %v72 = vpack.c.bf16 %v39, %v39
    %v73 = vpack.c.bf16 %v40, %v40
    %v74 = vpack.c.bf16 %v41, %v41
    %v75 = vpack.c.bf16 %v42, %v42
    %v76 = vpack.c.bf16 %v43, %v43
    %v77 = vpack.c.bf16 %v44, %v44
    %v78 = vpack.c.bf16 %v45, %v45
    %v79 = vpack.c.bf16 %v46, %v46
    %v80 = vpack.c.bf16 %v48, %v48
    %v81 = vpack.c.bf16 %v49, %v49
    %v82 = vpack.c.bf16 %v50, %v50
    %v83 = vpack.c.bf16 %v51, %v51
    %v84 = vpack.c.bf16 %v52, %v52
    %v85 = vpack.c.bf16 %v53, %v53
    %v86 = vpack.c.bf16 %v54, %v54
    %v87 = vpack.c.bf16 %v55, %v55
    %v88 = vpack.c.bf16 %v56, %v56
    %v89 = vpack.c.bf16 %v57, %v57
    %v90 = vpack.c.bf16 %v58, %v58
    %v91 = vpack.c.bf16 %v59, %v59
    %v92 = vpack.c.bf16 %v60, %v60
    %v93 = vpack.c.bf16 %v61, %v61
    %v94 = vpack.c.bf16 %v62, %v62
    %v95 = vpack.c.bf16 %v63, %v63
    %v112 = vunpack.c.l.b16 %v64
    %v113 = vunpack.c.l.b16 %v65
    %v114 = vunpack.c.l.b16 %v66
    %v115 = vunpack.c.l.b16 %v67
    %v116 = vunpack.c.l.b16 %v68
    %v117 = vunpack.c.l.b16 %v69
    %v118 = vunpack.c.l.b16 %v70
    %v119 = vunpack.c.l.b16 %v71
    %v120 = vunpack.c.l.b16 %v72
    %v121 = vunpack.c.l.b16 %v73
    %v122 = vunpack.c.l.b16 %v74
    %v123 = vunpack.c.l.b16 %v75
    %v124 = vunpack.c.l.b16 %v76
    %v125 = vunpack.c.l.b16 %v77
    %v126 = vunpack.c.l.b16 %v78
    %v127 = vunpack.c.l.b16 %v79
    %v128 = vpack.c.b16 %v113, %v112
    %v129 = vpack.c.b16 %v115, %v114
    %v130 = vpack.c.b16 %v117, %v116
    %v131 = vpack.c.b16 %v119, %v118
    %v132 = vpack.c.b16 %v121, %v120
    %v133 = vpack.c.b16 %v123, %v122
    %v134 = vpack.c.b16 %v125, %v124
    %v135 = vpack.c.b16 %v127, %v126
    %136 = vrot.lane.b32.xlu0 %v128, 2
    %v137 = vpop.permute.xlu0 %136
    %138 = vrot.lane.b32.xlu0 %v129, 2
    %v139 = vpop.permute.xlu0 %138
    %140 = vrot.lane.b32.xlu0 %v130, 2
    %v141 = vpop.permute.xlu0 %140
    %142 = vrot.lane.b32.xlu0 %v131, 2
    %v143 = vpop.permute.xlu0 %142
    %144 = vrot.lane.b32.xlu0 %v132, 2
    %v145 = vpop.permute.xlu0 %144
    %146 = vrot.lane.b32.xlu0 %v133, 2
    %v147 = vpop.permute.xlu0 %146
    %148 = vrot.lane.b32.xlu0 %v134, 2
    %v149 = vpop.permute.xlu0 %148
    %150 = vrot.lane.b32.xlu0 %v135, 2
    %v151 = vpop.permute.xlu0 %150
    %v168 = vunpack.c.l.b16 %v80
    %v169 = vunpack.c.l.b16 %v81
    %v170 = vunpack.c.l.b16 %v82
    %v171 = vunpack.c.l.b16 %v83
    %v172 = vunpack.c.l.b16 %v84
    %v173 = vunpack.c.l.b16 %v85
    %v174 = vunpack.c.l.b16 %v86
    %v175 = vunpack.c.l.b16 %v87
    %v176 = vunpack.c.l.b16 %v88
    %v177 = vunpack.c.l.b16 %v89
    %v178 = vunpack.c.l.b16 %v90
    %v179 = vunpack.c.l.b16 %v91
    %v180 = vunpack.c.l.b16 %v92
    %v181 = vunpack.c.l.b16 %v93
    %v182 = vunpack.c.l.b16 %v94
    %v183 = vunpack.c.l.b16 %v95
    %v184 = vpack.c.b16 %v169, %v168
    %v185 = vpack.c.b16 %v171, %v170
    %v186 = vpack.c.b16 %v173, %v172
    %v187 = vpack.c.b16 %v175, %v174
    %v188 = vpack.c.b16 %v177, %v176
    %v189 = vpack.c.b16 %v179, %v178
    %v190 = vpack.c.b16 %v181, %v180
    %v191 = vpack.c.b16 %v183, %v182
    %192 = vrot.lane.b32.xlu0 %v184, 20
    %v193 = vpop.permute.xlu0 %192
    %194 = vrot.lane.b32.xlu0 %v185, 20
    %v195 = vpop.permute.xlu0 %194
    %196 = vrot.lane.b32.xlu0 %v186, 20
    %v197 = vpop.permute.xlu0 %196
    %198 = vrot.lane.b32.xlu0 %v187, 20
    %v199 = vpop.permute.xlu0 %198
    %200 = vrot.lane.b32.xlu0 %v188, 20
    %v201 = vpop.permute.xlu0 %200
    %202 = vrot.lane.b32.xlu0 %v189, 20
    %v203 = vpop.permute.xlu0 %202
    %204 = vrot.lane.b32.xlu0 %v190, 20
    %v205 = vpop.permute.xlu0 %204
    %206 = vrot.lane.b32.xlu0 %v191, 20
    %v207 = vpop.permute.xlu0 %206
    %vm208 = vcmask 15360
    %v211 = vsel %vm208, 0, %v137
    %v213 = vsel %vm208, 0, %v139
    %v215 = vsel %vm208, 0, %v141
    %v217 = vsel %vm208, 0, %v143
    %v219 = vsel %vm208, 0, %v145
    %v221 = vsel %vm208, 0, %v147
    %v223 = vsel %vm208, 0, %v149
    %v225 = vsel %vm208, 0, %v151
    %vm226 = vcmask 146432
    %v227 = vsel %vm226, %v211, 0
    %v228 = vsel %vm226, %v213, 0
    %v229 = vsel %vm226, %v215, 0
    %v230 = vsel %vm226, %v217, 0
    %v231 = vsel %vm226, %v219, 0
    %v232 = vsel %vm226, %v221, 0
    %v233 = vsel %vm226, %v223, 0
    %v234 = vsel %vm226, %v225, 0
    %vm235 = vcmask 162816
    %v237 = vsel %vm235, %v227, %v193
    %v239 = vsel %vm235, %v228, %v195
    %v241 = vsel %vm235, %v229, %v197
    %v243 = vsel %vm235, %v230, %v199
    %v245 = vsel %vm235, %v231, %v201
    %v247 = vsel %vm235, %v232, %v203
    %v249 = vsel %vm235, %v233, %v205
    %v251 = vsel %vm235, %v234, %v207
    %vm252 = vcmask 293888
    %v253 = vsel %vm252, %v237, 0
    %v255 = vsel %vm252, %v239, 0
    %v257 = vsel %vm252, %v241, 0
    %v259 = vsel %vm252, %v243, 0
    %v261 = vsel %vm252, %v245, 0
    %v263 = vsel %vm252, %v247, 0
    %v265 = vsel %vm252, %v249, 0
    %v267 = vsel %vm252, %v251, 0
    %277 = vrot.lane.b32.xlu0 %v253, 127
    %v278 = vpop.permute.xlu0 %277
    %279 = vrot.lane.b32.xlu0 %v255, 127
    %v280 = vpop.permute.xlu0 %279
    %281 = vrot.lane.b32.xlu0 %v257, 127
    %v282 = vpop.permute.xlu0 %281
    %283 = vrot.lane.b32.xlu0 %v259, 127
    %v284 = vpop.permute.xlu0 %283
    %285 = vrot.lane.b32.xlu0 %v261, 127
    %v286 = vpop.permute.xlu0 %285
    %287 = vrot.lane.b32.xlu0 %v263, 127
    %v288 = vpop.permute.xlu0 %287
    %289 = vrot.lane.b32.xlu0 %v265, 127
    %v290 = vpop.permute.xlu0 %289
    %291 = vrot.lane.b32.xlu0 %v267, 127
    %v292 = vpop.permute.xlu0 %291
    %301 = vrot.lane.b32.xlu0 %v253, 126
    %v302 = vpop.permute.xlu0 %301
    %303 = vrot.lane.b32.xlu0 %v255, 126
    %v304 = vpop.permute.xlu0 %303
    %305 = vrot.lane.b32.xlu0 %v257, 126
    %v306 = vpop.permute.xlu0 %305
    %307 = vrot.lane.b32.xlu0 %v259, 126
    %v308 = vpop.permute.xlu0 %307
    %309 = vrot.lane.b32.xlu0 %v261, 126
    %v310 = vpop.permute.xlu0 %309
    %311 = vrot.lane.b32.xlu0 %v263, 126
    %v312 = vpop.permute.xlu0 %311
    %313 = vrot.lane.b32.xlu0 %v265, 126
    %v314 = vpop.permute.xlu0 %313
    %315 = vrot.lane.b32.xlu0 %v267, 126
    %v316 = vpop.permute.xlu0 %315
    %v325 = vld [vmem:[%s1] sm:$0xff]
    %v326 = vld [vmem:[%s1 + $0x8] sm:$0xf]
    %v327 = vld [vmem:[%s1 + $0xc] sm:$0xff]
    %v328 = vld [vmem:[%s1 + $0x14] sm:$0xf]
    %v329 = vld [vmem:[%s1 + $0x18] sm:$0xff]
    %v330 = vld [vmem:[%s1 + $0x20] sm:$0xf]
    %v331 = vld [vmem:[%s1 + $0x24] sm:$0xff]
    %v332 = vld [vmem:[%s1 + $0x2c] sm:$0xf]
    %v333 = vld [vmem:[%s1 + $0x30] sm:$0xff]
    %v334 = vld [vmem:[%s1 + $0x38] sm:$0xf]
    %v335 = vld [vmem:[%s1 + $0x3c] sm:$0xff]
    %v336 = vld [vmem:[%s1 + $0x44] sm:$0xf]
    %v337 = vld [vmem:[%s1 + $0x48] sm:$0xff]
    %v338 = vld [vmem:[%s1 + $0x50] sm:$0xf]
    %v339 = vld [vmem:[%s1 + $0x54] sm:$0xff]
    %v340 = vld [vmem:[%s1 + $0x5c] sm:$0xf]
    %v341 = vld [vmem:[%s2] sm:$0xff]
    %v342 = vld [vmem:[%s2 + $0x8] sm:$0xff]
    %v343 = vld [vmem:[%s2 + $0x10] sm:$0xff]
    %v344 = vld [vmem:[%s2 + $0x18] sm:$0xff]
    %v345 = vld [vmem:[%s2 + $0x20] sm:$0xff]
    %v346 = vld [vmem:[%s2 + $0x28] sm:$0xff]
    %v347 = vld [vmem:[%s2 + $0x30] sm:$0xff]
    %v348 = vld [vmem:[%s2 + $0x38] sm:$0xff]
    %350 = vset.pattern.permute.xlu0 0
    %351 = vperm.xlu0 %350, %v341
    %v352 = vpop.permute.xlu0 %351
    %355 = vset.pattern.permute.xlu0 0
    %356 = vperm.xlu0 %355, %v342
    %v357 = vpop.permute.xlu0 %356
    %360 = vset.pattern.permute.xlu0 0
    %361 = vperm.xlu0 %360, %v343
    %v362 = vpop.permute.xlu0 %361
    %365 = vset.pattern.permute.xlu0 0
    %366 = vperm.xlu0 %365, %v344
    %v367 = vpop.permute.xlu0 %366
    %370 = vset.pattern.permute.xlu0 0
    %371 = vperm.xlu0 %370, %v345
    %v372 = vpop.permute.xlu0 %371
    %375 = vset.pattern.permute.xlu0 0
    %376 = vperm.xlu0 %375, %v346
    %v377 = vpop.permute.xlu0 %376
    %380 = vset.pattern.permute.xlu0 0
    %381 = vperm.xlu0 %380, %v347
    %v382 = vpop.permute.xlu0 %381
    %385 = vset.pattern.permute.xlu0 0
    %386 = vperm.xlu0 %385, %v348
    %v387 = vpop.permute.xlu0 %386
    %v405 = vunpack.c.l.b16 %v325
    %v406 = vunpack.c.h.b16 %v325
    %v407 = vunpack.c.l.b16 %v326
    %v408 = vunpack.c.l.b16 %v327
    %v409 = vunpack.c.h.b16 %v327
    %v410 = vunpack.c.l.b16 %v328
    %v411 = vunpack.c.l.b16 %v329
    %v412 = vunpack.c.h.b16 %v329
    %v413 = vunpack.c.l.b16 %v330
    %v414 = vunpack.c.l.b16 %v331
    %v415 = vunpack.c.h.b16 %v331
    %v416 = vunpack.c.l.b16 %v332
    %v417 = vunpack.c.l.b16 %v333
    %v418 = vunpack.c.h.b16 %v333
    %v419 = vunpack.c.l.b16 %v334
    %v420 = vunpack.c.l.b16 %v335
    %v421 = vunpack.c.h.b16 %v335
    %v422 = vunpack.c.l.b16 %v336
    %v423 = vunpack.c.l.b16 %v337
    %v424 = vunpack.c.h.b16 %v337
    %v425 = vunpack.c.l.b16 %v338
    %v426 = vunpack.c.l.b16 %v339
    %v427 = vunpack.c.h.b16 %v339
    %v428 = vunpack.c.l.b16 %v340
    %v429 = vpack.c.b16 %v408, %v405
    %v430 = vpack.c.b16 %v409, %v406
    %v431 = vpack.c.b16 %v410, %v407
    %v432 = vpack.c.b16 %v414, %v411
    %v433 = vpack.c.b16 %v415, %v412
    %v434 = vpack.c.b16 %v416, %v413
    %v435 = vpack.c.b16 %v420, %v417
    %v436 = vpack.c.b16 %v421, %v418
    %v437 = vpack.c.b16 %v422, %v419
    %v438 = vpack.c.b16 %v426, %v423
    %v439 = vpack.c.b16 %v427, %v424
    %v440 = vpack.c.b16 %v428, %v425
    %453 = vmatpush.bf16.msra.mxu0 %v267
    %454 = vmatpush.bf16.msra.mxu0 %v265
    %455 = vmatpush.bf16.msra.mxu0 %v263
    %456 = vmatpush.bf16.msra.mxu0 %v261
    %457 = vmatpush.bf16.msra.mxu0 %v259
    %458 = vmatpush.bf16.msra.mxu0 %v257
    %459 = vmatpush.bf16.msra.mxu0 %v255
    %460 = vmatpush.bf16.msra.mxu0 %v253
    %461 = vmatmul.bf16.gmra.mxu0 %v429
    %v462 = vpop.f32.mrf.mxu0
    %v463 = vadd.f32 %v352, %v462
    %v464 = vpop.f32.mrf.mxu0
    %v465 = vadd.f32 %v357, %v464
    %466 = vmatmul.bf16.gmra.mxu0 %v432
    %v467 = vpop.f32.mrf.mxu0
    %v468 = vadd.f32 %v362, %v467
    %v469 = vpop.f32.mrf.mxu0
    %v470 = vadd.f32 %v367, %v469
    %471 = vmatmul.bf16.gmra.mxu0 %v435
    %v472 = vpop.f32.mrf.mxu0
    %v473 = vadd.f32 %v372, %v472
    %v474 = vpop.f32.mrf.mxu0
    %v475 = vadd.f32 %v377, %v474
    %476 = vmatmul.bf16.gmra.mxu0 %v438
    %v477 = vpop.f32.mrf.mxu0
    %v478 = vadd.f32 %v382, %v477
    %v479 = vpop.f32.mrf.mxu0
    %v480 = vadd.f32 %v387, %v479
    %481 = vdwg.mxu0
    %482 = vmatpush.bf16.msra.mxu0 %v292
    %483 = vmatpush.bf16.msra.mxu0 %v290
    %484 = vmatpush.bf16.msra.mxu0 %v288
    %485 = vmatpush.bf16.msra.mxu0 %v286
    %486 = vmatpush.bf16.msra.mxu0 %v284
    %487 = vmatpush.bf16.msra.mxu0 %v282
    %488 = vmatpush.bf16.msra.mxu0 %v280
    %489 = vmatpush.bf16.msra.mxu0 %v278
    %490 = vmatmul.bf16.gmra.mxu0 %v430
    %v491 = vpop.f32.mrf.mxu0
    %v492 = vadd.f32 %v463, %v491
    %v493 = vpop.f32.mrf.mxu0
    %v494 = vadd.f32 %v465, %v493
    %495 = vmatmul.bf16.gmra.mxu0 %v433
    %v496 = vpop.f32.mrf.mxu0
    %v497 = vadd.f32 %v468, %v496
    %v498 = vpop.f32.mrf.mxu0
    %v499 = vadd.f32 %v470, %v498
    %500 = vmatmul.bf16.gmra.mxu0 %v436
    %v501 = vpop.f32.mrf.mxu0
    %v502 = vadd.f32 %v473, %v501
    %v503 = vpop.f32.mrf.mxu0
    %v504 = vadd.f32 %v475, %v503
    %505 = vmatmul.bf16.gmra.mxu0 %v439
    %v506 = vpop.f32.mrf.mxu0
    %v507 = vadd.f32 %v478, %v506
    %v508 = vpop.f32.mrf.mxu0
    %v509 = vadd.f32 %v480, %v508
    %510 = vdwg.mxu0
    %511 = vmatpush.bf16.msra.mxu0 %v316
    %512 = vmatpush.bf16.msra.mxu0 %v314
    %513 = vmatpush.bf16.msra.mxu0 %v312
    %514 = vmatpush.bf16.msra.mxu0 %v310
    %515 = vmatpush.bf16.msra.mxu0 %v308
    %516 = vmatpush.bf16.msra.mxu0 %v306
    %517 = vmatpush.bf16.msra.mxu0 %v304
    %518 = vmatpush.bf16.msra.mxu0 %v302
    %519 = vmatmul.bf16.gmra.mxu0 %v431
    %v520 = vpop.f32.mrf.mxu0
    %v521 = vadd.f32 %v492, %v520
    %v522 = vpop.f32.mrf.mxu0
    %v523 = vadd.f32 %v494, %v522
    %524 = vmatmul.bf16.gmra.mxu0 %v434
    %v525 = vpop.f32.mrf.mxu0
    %v526 = vadd.f32 %v497, %v525
    %v527 = vpop.f32.mrf.mxu0
    %v528 = vadd.f32 %v499, %v527
    %529 = vmatmul.bf16.gmra.mxu0 %v437
    %v530 = vpop.f32.mrf.mxu0
    %v531 = vadd.f32 %v502, %v530
    %v532 = vpop.f32.mrf.mxu0
    %v533 = vadd.f32 %v504, %v532
    %534 = vmatmul.bf16.gmra.mxu0 %v440
    %v535 = vpop.f32.mrf.mxu0
    %v536 = vadd.f32 %v507, %v535
    %v537 = vpop.f32.mrf.mxu0
    %v538 = vadd.f32 %v509, %v537
    %539 = vdwg.mxu0
    %v540 = vmax.f32 %v521, 0.0
    %v541 = vmax.f32 %v523, 0.0
    %v542 = vmax.f32 %v526, 0.0
    %v543 = vmax.f32 %v528, 0.0
    %v544 = vmax.f32 %v531, 0.0
    %v545 = vmax.f32 %v533, 0.0
    %v546 = vmax.f32 %v536, 0.0
    %v547 = vmax.f32 %v538, 0.0
    %v548 = vpack.c.bf16 %v540, %v540
    %v549 = vpack.c.bf16 %v541, %v541
    %v550 = vpack.c.bf16 %v542, %v542
    %v551 = vpack.c.bf16 %v543, %v543
    %v552 = vpack.c.bf16 %v544, %v544
    %v553 = vpack.c.bf16 %v545, %v545
    %v554 = vpack.c.bf16 %v546, %v546
    %v555 = vpack.c.bf16 %v547, %v547
    %v564 = vunpack.c.l.b16 %v548
    %v565 = vunpack.c.l.b16 %v549
    %v566 = vunpack.c.l.b16 %v550
    %v567 = vunpack.c.l.b16 %v551
    %v568 = vunpack.c.l.b16 %v552
    %v569 = vunpack.c.l.b16 %v553
    %v570 = vunpack.c.l.b16 %v554
    %v571 = vunpack.c.l.b16 %v555
    %v572 = vpack.c.b16 %v565, %v564
    %v573 = vpack.c.b16 %v567, %v566
    %v574 = vpack.c.b16 %v569, %v568
    %v575 = vpack.c.b16 %v571, %v570
    %576 = vrot.lane.b32.xlu0 %v572, 1
    %v577 = vpop.permute.xlu0 %576
    %578 = vrot.lane.b32.xlu0 %v573, 1
    %v579 = vpop.permute.xlu0 %578
    %580 = vrot.lane.b32.xlu0 %v574, 1
    %v581 = vpop.permute.xlu0 %580
    %582 = vrot.lane.b32.xlu0 %v575, 1
    %v583 = vpop.permute.xlu0 %582
    %v585 = vsel %vm208, 0, %v577
    %v587 = vsel %vm208, 0, %v579
    %v589 = vsel %vm208, 0, %v581
    %v591 = vsel %vm208, 0, %v583
    %v592 = vsel %vm226, %v585, 0
    %v593 = vsel %vm226, %v587, 0
    %v594 = vsel %vm226, %v589, 0
    %v595 = vsel %vm226, %v591, 0
    %v596 = vsel %vm235, %v592, %v577
    %v597 = vsel %vm235, %v593, %v579
    %v598 = vsel %vm235, %v594, %v581
    %v599 = vsel %vm235, %v595, %v583
    %v600 = vsel %vm252, %v596, 0
    %v602 = vsel %vm252, %v597, 0
    %v604 = vsel %vm252, %v598, 0
    %v606 = vsel %vm252, %v599, 0
    %612 = vrot.lane.b32.xlu0 %v600, 127
    %v613 = vpop.permute.xlu0 %612
    %614 = vrot.lane.b32.xlu0 %v602, 127
    %v615 = vpop.permute.xlu0 %614
    %616 = vrot.lane.b32.xlu0 %v604, 127
    %v617 = vpop.permute.xlu0 %616
    %618 = vrot.lane.b32.xlu0 %v606, 127
    %v619 = vpop.permute.xlu0 %618
    %624 = vrot.lane.b32.xlu0 %v600, 126
    %v625 = vpop.permute.xlu0 %624
    %626 = vrot.lane.b32.xlu0 %v602, 126
    %v627 = vpop.permute.xlu0 %626
    %628 = vrot.lane.b32.xlu0 %v604, 126
    %v629 = vpop.permute.xlu0 %628
    %630 = vrot.lane.b32.xlu0 %v606, 126
    %v631 = vpop.permute.xlu0 %630
    %v636 = vld [vmem:[%s3] sm:$0xff]
    %v637 = vld [vmem:[%s3 + $0x8] sm:$0xff]
    %v638 = vld [vmem:[%s3 + $0x10] sm:$0xff]
    %v639 = vld [vmem:[%s3 + $0x18] sm:$0xff]
    %v640 = vld [vmem:[%s3 + $0x20] sm:$0xff]
    %v641 = vld [vmem:[%s3 + $0x28] sm:$0xff]
    %v642 = vld [vmem:[%s3 + $0x30] sm:$0xff]
    %v643 = vld [vmem:[%s3 + $0x38] sm:$0xff]
    %v644 = vld [vmem:[%s4] sm:$0xff]
    %v645 = vld [vmem:[%s4 + $0x8] sm:$0xff]
    %v646 = vld [vmem:[%s4 + $0x10] sm:$0xff]
    %v647 = vld [vmem:[%s4 + $0x18] sm:$0xff]
    %v648 = vld [vmem:[%s4 + $0x20] sm:$0xff]
    %v649 = vld [vmem:[%s4 + $0x28] sm:$0xff]
    %v650 = vld [vmem:[%s4 + $0x30] sm:$0xff]
    %v651 = vld [vmem:[%s4 + $0x38] sm:$0xff]
    %653 = vset.pattern.permute.xlu0 0
    %654 = vperm.xlu0 %653, %v644
    %v655 = vpop.permute.xlu0 %654
    %658 = vset.pattern.permute.xlu0 0
    %659 = vperm.xlu0 %658, %v645
    %v660 = vpop.permute.xlu0 %659
    %663 = vset.pattern.permute.xlu0 0
    %664 = vperm.xlu0 %663, %v646
    %v665 = vpop.permute.xlu0 %664
    %668 = vset.pattern.permute.xlu0 0
    %669 = vperm.xlu0 %668, %v647
    %v670 = vpop.permute.xlu0 %669
    %673 = vset.pattern.permute.xlu0 0
    %674 = vperm.xlu0 %673, %v648
    %v675 = vpop.permute.xlu0 %674
    %678 = vset.pattern.permute.xlu0 0
    %679 = vperm.xlu0 %678, %v649
    %v680 = vpop.permute.xlu0 %679
    %683 = vset.pattern.permute.xlu0 0
    %684 = vperm.xlu0 %683, %v650
    %v685 = vpop.permute.xlu0 %684
    %688 = vset.pattern.permute.xlu0 0
    %689 = vperm.xlu0 %688, %v651
    %v690 = vpop.permute.xlu0 %689
    %v700 = vunpack.c.l.b16 %v636
    %v701 = vunpack.c.h.b16 %v636
    %v702 = vunpack.c.l.b16 %v637
    %v703 = vunpack.c.h.b16 %v637
    %v704 = vunpack.c.l.b16 %v638
    %v705 = vunpack.c.h.b16 %v638
    %v706 = vunpack.c.l.b16 %v639
    %v707 = vunpack.c.h.b16 %v639
    %v708 = vunpack.c.l.b16 %v640
    %v709 = vunpack.c.h.b16 %v640
    %v710 = vunpack.c.l.b16 %v641
    %v711 = vunpack.c.h.b16 %v641
    %v712 = vunpack.c.l.b16 %v642
    %v713 = vunpack.c.h.b16 %v642
    %v714 = vunpack.c.l.b16 %v643
    %v715 = vunpack.c.h.b16 %v643
    %v716 = vpack.c.b16 %v702, %v700
    %v717 = vpack.c.b16 %v703, %v701
    %v718 = vpack.c.b16 %v706, %v704
    %v719 = vpack.c.b16 %v707, %v705
    %v720 = vpack.c.b16 %v710, %v708
    %v721 = vpack.c.b16 %v711, %v709
    %v722 = vpack.c.b16 %v714, %v712
    %v723 = vpack.c.b16 %v715, %v713
    %vm728 = vcmask 523264
    %v730 = vsel %vm728, %v717, 0
    %v733 = vsel %vm728, %v719, 0
    %v736 = vsel %vm728, %v721, 0
    %v739 = vsel %vm728, %v723, 0
    %741 = vmatpush.bf16.msra.mxu0 %v619
    %742 = vmatpush.bf16.msra.mxu0 %v617
    %743 = vmatpush.bf16.msra.mxu0 %v615
    %744 = vmatpush.bf16.msra.mxu0 %v613
    %745 = vmatpush.bf16.msra.mxu0 %v606
    %746 = vmatpush.bf16.msra.mxu0 %v604
    %747 = vmatpush.bf16.msra.mxu0 %v602
    %748 = vmatpush.bf16.msra.mxu0 %v600
    %749 = vmatmul.bf16.gmra.mxu0 %v716
    %v750 = vpop.f32.mrf.mxu0
    %v751 = vadd.f32 %v655, %v750
    %v752 = vpop.f32.mrf.mxu0
    %v753 = vadd.f32 %v660, %v752
    %754 = vmatmul.bf16.gmra.mxu0 %v718
    %v755 = vpop.f32.mrf.mxu0
    %v756 = vadd.f32 %v665, %v755
    %v757 = vpop.f32.mrf.mxu0
    %v758 = vadd.f32 %v670, %v757
    %759 = vmatmul.bf16.gmra.mxu0 %v720
    %v760 = vpop.f32.mrf.mxu0
    %v761 = vadd.f32 %v675, %v760
    %v762 = vpop.f32.mrf.mxu0
    %v763 = vadd.f32 %v680, %v762
    %764 = vmatmul.bf16.gmra.mxu0 %v722
    %v765 = vpop.f32.mrf.mxu0
    %v766 = vadd.f32 %v685, %v765
    %v767 = vpop.f32.mrf.mxu0
    %v768 = vadd.f32 %v690, %v767
    %769 = vdwg.mxu0
    %770 = vmatpush.bf16.msra.mxu0 0
    %771 = vmatpush.bf16.msra.mxu0 0
    %772 = vmatpush.bf16.msra.mxu0 0
    %773 = vmatpush.bf16.msra.mxu0 0
    %774 = vmatpush.bf16.msra.mxu0 %v631
    %775 = vmatpush.bf16.msra.mxu0 %v629
    %776 = vmatpush.bf16.msra.mxu0 %v627
    %777 = vmatpush.bf16.msra.mxu0 %v625
    %778 = vmatmul.bf16.gmra.mxu0 %v730
    %v779 = vpop.f32.mrf.mxu0
    %v780 = vadd.f32 %v751, %v779
    %v781 = vpop.f32.mrf.mxu0
    %v782 = vadd.f32 %v753, %v781
    %783 = vmatmul.bf16.gmra.mxu0 %v733
    %v784 = vpop.f32.mrf.mxu0
    %v785 = vadd.f32 %v756, %v784
    %v786 = vpop.f32.mrf.mxu0
    %v787 = vadd.f32 %v758, %v786
    %788 = vmatmul.bf16.gmra.mxu0 %v736
    %v789 = vpop.f32.mrf.mxu0
    %v790 = vadd.f32 %v761, %v789
    %v791 = vpop.f32.mrf.mxu0
    %v792 = vadd.f32 %v763, %v791
    %793 = vmatmul.bf16.gmra.mxu0 %v739
    %v794 = vpop.f32.mrf.mxu0
    %v795 = vadd.f32 %v766, %v794
    %v796 = vpop.f32.mrf.mxu0
    %v797 = vadd.f32 %v768, %v796
    %798 = vdwg.mxu0
    %v799 = vmax.f32 %v780, 0.0
    %v800 = vmax.f32 %v782, 0.0
    %v801 = vmax.f32 %v785, 0.0
    %v802 = vmax.f32 %v787, 0.0
    %v803 = vmax.f32 %v790, 0.0
    %v804 = vmax.f32 %v792, 0.0
    %v805 = vmax.f32 %v795, 0.0
    %v806 = vmax.f32 %v797, 0.0
    %v807 = vpack.c.bf16 %v799, %v799
    %v808 = vpack.c.bf16 %v800, %v800
    %v809 = vpack.c.bf16 %v801, %v801
    %v810 = vpack.c.bf16 %v802, %v802
    %v811 = vpack.c.bf16 %v803, %v803
    %v812 = vpack.c.bf16 %v804, %v804
    %v813 = vpack.c.bf16 %v805, %v805
    %v814 = vpack.c.bf16 %v806, %v806
    %v823 = vunpack.c.l.b16 %v807
    %v824 = vunpack.c.l.b16 %v808
    %v825 = vunpack.c.l.b16 %v809
    %v826 = vunpack.c.l.b16 %v810
    %v827 = vunpack.c.l.b16 %v811
    %v828 = vunpack.c.l.b16 %v812
    %v829 = vunpack.c.l.b16 %v813
    %v830 = vunpack.c.l.b16 %v814
    %v831 = vpack.c.b16 %v824, %v823
    %v832 = vpack.c.b16 %v826, %v825
    %v833 = vpack.c.b16 %v828, %v827
    %v834 = vpack.c.b16 %v830, %v829
    %835 = vrot.lane.b32.xlu0 %v831, 1
    %v836 = vpop.permute.xlu0 %835
    %837 = vrot.lane.b32.xlu0 %v832, 1
    %v838 = vpop.permute.xlu0 %837
    %839 = vrot.lane.b32.xlu0 %v833, 1
    %v840 = vpop.permute.xlu0 %839
    %841 = vrot.lane.b32.xlu0 %v834, 1
    %v842 = vpop.permute.xlu0 %841
    %v844 = vsel %vm208, 0, %v836
    %v846 = vsel %vm208, 0, %v838
    %v848 = vsel %vm208, 0, %v840
    %v850 = vsel %vm208, 0, %v842
    %v851 = vsel %vm226, %v844, 0
    %v852 = vsel %vm226, %v846, 0
    %v853 = vsel %vm226, %v848, 0
    %v854 = vsel %vm226, %v850, 0
    %v855 = vsel %vm235, %v851, %v836
    %v856 = vsel %vm235, %v852, %v838
    %v857 = vsel %vm235, %v853, %v840
    %v858 = vsel %vm235, %v854, %v842
    %v859 = vsel %vm252, %v855, 0
    %v861 = vsel %vm252, %v856, 0
    %v863 = vsel %vm252, %v857, 0
    %v865 = vsel %vm252, %v858, 0
    %871 = vrot.lane.b32.xlu0 %v859, 127
    %v872 = vpop.permute.xlu0 %871
    %873 = vrot.lane.b32.xlu0 %v861, 127
    %v874 = vpop.permute.xlu0 %873
    %875 = vrot.lane.b32.xlu0 %v863, 127
    %v876 = vpop.permute.xlu0 %875
    %877 = vrot.lane.b32.xlu0 %v865, 127
    %v878 = vpop.permute.xlu0 %877
    %883 = vrot.lane.b32.xlu0 %v859, 126
    %v884 = vpop.permute.xlu0 %883
    %885 = vrot.lane.b32.xlu0 %v861, 126
    %v886 = vpop.permute.xlu0 %885
    %887 = vrot.lane.b32.xlu0 %v863, 126
    %v888 = vpop.permute.xlu0 %887
    %889 = vrot.lane.b32.xlu0 %v865, 126
    %v890 = vpop.permute.xlu0 %889
    %v895 = vld [vmem:[%s5] sm:$0xf]
    %v896 = vld [vmem:[%s6] sm:$0xf]
    %898 = vset.pattern.permute.xlu0 0
    %899 = vperm.xlu0 %898, %v896
    %v900 = vpop.permute.xlu0 %899
    %903 = vst [vmem:[#allocation1] ss:$4 sm:$0xff] %v895
    %v904 = vld.sshfl [vmem:[#allocation1] sm:$0xff pattern:$0x73625140]
    %v905 = vld.sshfl [vmem:[#allocation1 + $0x8] sm:$0xff pattern:$0x73625140]
    %v907 = vsel %vm728, %v905, 0
    %909 = vmatpush.bf16.msra.mxu0 %v878
    %910 = vmatpush.bf16.msra.mxu0 %v876
    %911 = vmatpush.bf16.msra.mxu0 %v874
    %912 = vmatpush.bf16.msra.mxu0 %v872
    %913 = vmatpush.bf16.msra.mxu0 %v865
    %914 = vmatpush.bf16.msra.mxu0 %v863
    %915 = vmatpush.bf16.msra.mxu0 %v861
    %916 = vmatpush.bf16.msra.mxu0 %v859
    %917 = vmatmul.bf16.gmra.mxu0 %v904
    %v918 = vpop.f32.mrf.mxu0
    %v919 = vadd.f32 %v900, %v918
    %v920 = vpop.f32.mrf.mxu0
    %921 = vdwg.mxu0
    %922 = vmatpush.bf16.msra.mxu0 0
    %923 = vmatpush.bf16.msra.mxu0 0
    %924 = vmatpush.bf16.msra.mxu0 0
    %925 = vmatpush.bf16.msra.mxu0 0
    %926 = vmatpush.bf16.msra.mxu0 %v890
    %927 = vmatpush.bf16.msra.mxu0 %v888
    %928 = vmatpush.bf16.msra.mxu0 %v886
    %929 = vmatpush.bf16.msra.mxu0 %v884
    %930 = vmatmul.bf16.gmra.mxu0 %v907
    %v931 = vpop.f32.mrf.mxu0
    %v932 = vadd.f32 %v919, %v931
    %v933 = vpop.f32.mrf.mxu0
    %934 = vdwg.mxu0
    %v935 = vpack.c.bf16 %v932, %v932
    %v937 = vunpack.c.l.b16 %v935
    %v938 = vpack.c.b16 %v937, %v937
    %v939 = vrot.slane %v938, 6
    %940 = vrot.lane.b32.xlu0 %v939, 110
    %v941 = vpop.permute.xlu0 %940
    %vm942 = vcmask 1041408
    %v945 = vsel %vm942, %v935, %v941
    %v946 = vld [vmem:[%s7] sm:$0xf]
    %v947 = vld [vmem:[%s7 + $0x4] sm:$0xf]
    %949 = vrot.lane.b32.xlu0 %v945, 127
    %v950 = vpop.permute.xlu0 %949
    %v953 = vunpack.c.l.b16 %v946
    %v954 = vunpack.c.l.b16 %v947
    %v955 = vpack.c.b16 %v954, %v953
    %vm957 = vcmask 130048
    %v959 = vsel %vm957, %v950, 0
    %961 = vmatpush.bf16.msra.mxu0 0
    %962 = vmatpush.bf16.msra.mxu0 0
    %963 = vmatpush.bf16.msra.mxu0 0
    %964 = vmatpush.bf16.msra.mxu0 0
    %965 = vmatpush.bf16.msra.mxu0 0
    %966 = vmatpush.bf16.msra.mxu0 0
    %967 = vmatpush.bf16.msra.mxu0 0
    %968 = vmatpush.bf16.msra.mxu0 %v955
    %969 = vmatmul.bf16.gmra.mxu0 %v959
    %v970 = vpop.f32.mrf.mxu0
    %v971 = vadd.f32 0.0, %v970
    %v972 = vpop.f32.mrf.mxu0
    %973 = vdwg.mxu0
    %vm974 = vcmask 257024
    %975 = vst.msk [vmem:[#allocation2] sm:$0xf] %vm974, %v971
    %s976 = scalar_lea.vmem [#allocation2], 4
    %vm977 = vcmask 261124
    %978 = vst.msk [vmem:[%s976 - $0x4] sm:$0xf0] %vm977, %v971
    // Predicated region
    $region34: #{tpu_custom_call.1} parent=1 // pred_check
      _
    $region35: #{tpu_custom_call.1} parent=1 // pred_check_branch
      %980 = sbr.rel (0) target = $region37
    $region36: #{tpu_custom_call.1} parent=1 // pred_region
      %982 = vsyncadd [#allocation3], 0
      %s983 = sshll.u32 [#allocation2], 4
      %s984 = int_to_ptr.vmem [resolvable:$true] %s983
      %s985 = sshll.u32 %s8, 4
      %s986 = int_to_ptr.hbm [resolvable:$true] %s985
      %991 = dma.vmem_to_hbm [thread:$0]  %s984, 128, %s986, [#allocation3], 64, 64, 4
    $region37: #{tpu_custom_call.1} parent=1 // pred_fallthru
      _
    // Predicated region
    $region38: #{tpu_custom_call.1} parent=1 // pred_check
      _
    $region39: #{tpu_custom_call.1} parent=1 // pred_check_branch
      %993 = sbr.rel (0) target = $region41
    $region40: #{tpu_custom_call.1} parent=1 // pred_region
      %995 = dma.done [#allocation3], 128
    $region41: #{tpu_custom_call.1} parent=1 // pred_fallthru
      _
    %996 = vsyncpa [#allocation3], 1

</llo_original>
